<compile_context>
chip_gen: v7x
topology: tpu7x:2x2x1
jax: 0.10.0
libtpu: 0.0.40
codegen_flags: <defaults>
</compile_context>

<pallas_src>
import jax
import jax.numpy as jnp
from jax.experimental import pallas as pl
from jax.experimental.pallas import tpu as pltpu

HIDDEN = 32
LANE = 128


def dqn_mlp_kernel(x_ref, w1_ref, b1_ref, w2_ref, b2_ref, w3_ref, b3_ref, out_ref):
    # fc1 + relu
    h1 = jnp.dot(x_ref[...], w1_ref[...], preferred_element_type=jnp.float32)
    h1 = jnp.maximum(h1 + b1_ref[...], 0.0)          # (TB, 32) + (1, 32)
    # fc2 + relu
    h2 = jnp.dot(h1, w2_ref[...], preferred_element_type=jnp.float32)
    h2 = jnp.maximum(h2 + b2_ref[...], 0.0)
    # fc3 (action values, no activation) — lane-dense (TB, 128) store
    out_ref[...] = (
        jnp.dot(h2, w3_ref[...], preferred_element_type=jnp.float32) + b3_ref[...]
    )


def dqn_mlp(x, w1, b1, w2, b2, w3, b3, *, block_batch=1024):
    """x: (batch, state_size) f32; weights stored as (in, out), biases (1, out)."""
    batch, state_size = x.shape
    hidden = w1.shape[1]
    action_size = w3.shape[1]

    # --- lane-dense output: pad fc3's output width to a multiple of 128 ---
    pad_n = pl.cdiv(action_size, LANE) * LANE
    w3p = jnp.pad(w3, ((0, 0), (0, pad_n - action_size)))
    b3p = jnp.pad(b3, ((0, 0), (0, pad_n - action_size)))

    # --- batch tiling: TB multiple of 8 (sublane), capped at block_batch ---
    tb = min(block_batch, pl.cdiv(batch, 8) * 8)
    pad_b = pl.cdiv(batch, tb) * tb
    if pad_b != batch:
        x = jnp.pad(x, ((0, pad_b - batch), (0, 0)))
    grid = (pad_b // tb,)

    flops = 2 * pad_b * (state_size * hidden + hidden * hidden + hidden * pad_n)
    bytes_accessed = 4 * (
        pad_b * state_size                       # x
        + state_size * hidden + hidden           # fc1
        + hidden * hidden + hidden               # fc2
        + hidden * pad_n + pad_n                 # fc3 (padded)
        + pad_b * pad_n                          # output
    )

    out = pl.pallas_call(
        dqn_mlp_kernel,
        out_shape=jax.ShapeDtypeStruct((pad_b, pad_n), jnp.float32),
        grid=grid,
        in_specs=[
            pl.BlockSpec((tb, state_size), lambda i: (i, 0)),   # x: tiled over batch
            pl.BlockSpec(w1.shape, lambda i: (0, 0)),           # weights/biases:
            pl.BlockSpec(b1.shape, lambda i: (0, 0)),           # constant index_map,
            pl.BlockSpec(w2.shape, lambda i: (0, 0)),           # VMEM-resident across
            pl.BlockSpec(b2.shape, lambda i: (0, 0)),           # grid steps
            pl.BlockSpec(w3p.shape, lambda i: (0, 0)),
            pl.BlockSpec(b3p.shape, lambda i: (0, 0)),
        ],
        out_specs=pl.BlockSpec((tb, pad_n), lambda i: (i, 0)),
        compiler_params=pltpu.CompilerParams(
            dimension_semantics=("parallel",),   # megacore sharding on v7x
        ),
        cost_estimate=pl.CostEstimate(
            flops=flops, transcendentals=0, bytes_accessed=bytes_accessed
        ),
    )(x, w1, b1, w2, b2, w3p, b3p)

    return out[:batch, :action_size]


def init_params(key, state_size, action_size):
    """Deterministic init mimicking PyTorch Linear default (uniform ±1/sqrt(fan_in)).
    Weights are stored as (in, out), i.e. already transposed vs torch's (out, in)."""
    ks = jax.random.split(key, 6)

    def linear(kw, kb, fan_in, fan_out):
        bound = 1.0 / jnp.sqrt(jnp.float32(fan_in))
        w = jax.random.uniform(kw, (fan_in, fan_out), jnp.float32, -bound, bound)
        b = jax.random.uniform(kb, (1, fan_out), jnp.float32, -bound, bound)
        return w, b

    w1, b1 = linear(ks[0], ks[1], state_size, HIDDEN)
    w2, b2 = linear(ks[2], ks[3], HIDDEN, HIDDEN)
    w3, b3 = linear(ks[4], ks[5], HIDDEN, action_size)
    return w1, b1, w2, b2, w3, b3


def reference(x, w1, b1, w2, b2, w3, b3):
    h1 = jnp.maximum(x @ w1 + b1, 0.0)
    h2 = jnp.maximum(h1 @ w2 + b2, 0.0)
    return h2 @ w3 + b3


if __name__ == "__main__":
    state_size = 8
    action_size = 4
    batch = 50  # not a multiple of the tile — exercises grid + padding path

    key = jax.random.PRNGKey(0)
    k_x, k_p = jax.random.split(key)
    x = jax.random.normal(k_x, (batch, state_size), jnp.float32)
    params = init_params(k_p, state_size, action_size)

    # Small block_batch here so the test runs several grid steps; for real
    # DQN training batches leave the default (1024), which is safe in VMEM
    # on v5e/v6e (128 MiB) and v7x (64 MiB).
    out = dqn_mlp(x, *params, block_batch=16)
    out = jax.block_until_ready(out)

    ref = reference(x, *params)
    assert out.shape == (batch, action_size)
    assert jnp.allclose(out, ref, atol=1e-5, rtol=1e-5)

    print("KERNEL_OK")
</pallas_src>

<mosaic_0001>
module attributes {stable_mosaic.version = 11 : i64} {
  func.func @dqn_mlp_kernel(%arg0: i32, %arg1: memref<16x8xf32, #tpu.memory_space<vmem>>, %arg2: memref<8x32xf32, #tpu.memory_space<vmem>>, %arg3: memref<1x32xf32, #tpu.memory_space<vmem>>, %arg4: memref<32x32xf32, #tpu.memory_space<vmem>>, %arg5: memref<1x32xf32, #tpu.memory_space<vmem>>, %arg6: memref<32x128xf32, #tpu.memory_space<vmem>>, %arg7: memref<1x128xf32, #tpu.memory_space<vmem>>, %arg8: memref<16x128xf32, #tpu.memory_space<vmem>>) attributes {dimension_semantics = [#tpu.dimension_semantics<parallel>], iteration_bounds = array<i64: 4>, scalar_prefetch = 0 : i64, scratch_operands = 0 : i64, tpu.core_type = #tpu.core_type<tc>, window_params = [{transform_indices = @transform_0, window_bounds = array<i64: 16, 8>}, {pipeline_mode = #tpu.pipeline_mode<synchronous>, transform_indices = @transform_1, window_bounds = array<i64: 8, 32>}, {pipeline_mode = #tpu.pipeline_mode<synchronous>, transform_indices = @transform_2, window_bounds = array<i64: 1, 32>}, {pipeline_mode = #tpu.pipeline_mode<synchronous>, transform_indices = @transform_3, window_bounds = array<i64: 32, 32>}, {pipeline_mode = #tpu.pipeline_mode<synchronous>, transform_indices = @transform_4, window_bounds = array<i64: 1, 32>}, {pipeline_mode = #tpu.pipeline_mode<synchronous>, transform_indices = @transform_5, window_bounds = array<i64: 32, 128>}, {pipeline_mode = #tpu.pipeline_mode<synchronous>, transform_indices = @transform_6, window_bounds = array<i64: 1, 128>}, {transform_indices = @transform_7, window_bounds = array<i64: 16, 128>}]} {
    %c0 = arith.constant 0 : index
    %c0_0 = arith.constant 0 : index
    %0 = vector.load %arg1[%c0, %c0_0] : memref<16x8xf32, #tpu.memory_space<vmem>>, vector<16x8xf32>
    %c0_1 = arith.constant 0 : index
    %c0_2 = arith.constant 0 : index
    %1 = vector.load %arg2[%c0_1, %c0_2] : memref<8x32xf32, #tpu.memory_space<vmem>>, vector<8x32xf32>
    %cst = arith.constant dense<0.000000e+00> : vector<16x32xf32>
    %2 = tpu.matmul %0, %1, %cst {dimension_numbers = #tpu.dot_dimension_numbers<[1], [0], [0], [1], [0, 0, 1, 1], [], []>} : vector<16x8xf32>, vector<8x32xf32>, vector<16x32xf32> -> vector<16x32xf32>
    %c0_3 = arith.constant 0 : index
    %c0_4 = arith.constant 0 : index
    %3 = vector.load %arg3[%c0_3, %c0_4] : memref<1x32xf32, #tpu.memory_space<vmem>>, vector<1x32xf32>
    %4 = vector.broadcast %3 : vector<1x32xf32> to vector<16x32xf32>
    %5 = arith.addf %2, %4 : vector<16x32xf32>
    %cst_5 = arith.constant 0.000000e+00 : f32
    %6 = vector.broadcast %cst_5 : f32 to vector<16x32xf32>
    %7 = arith.maximumf %5, %6 : vector<16x32xf32>
    %c0_6 = arith.constant 0 : index
    %c0_7 = arith.constant 0 : index
    %8 = vector.load %arg4[%c0_6, %c0_7] : memref<32x32xf32, #tpu.memory_space<vmem>>, vector<32x32xf32>
    %cst_8 = arith.constant dense<0.000000e+00> : vector<16x32xf32>
    %9 = tpu.matmul %7, %8, %cst_8 {dimension_numbers = #tpu.dot_dimension_numbers<[1], [0], [0], [1], [0, 0, 1, 1], [], []>} : vector<16x32xf32>, vector<32x32xf32>, vector<16x32xf32> -> vector<16x32xf32>
    %c0_9 = arith.constant 0 : index
    %c0_10 = arith.constant 0 : index
    %10 = vector.load %arg5[%c0_9, %c0_10] : memref<1x32xf32, #tpu.memory_space<vmem>>, vector<1x32xf32>
    %11 = vector.broadcast %10 : vector<1x32xf32> to vector<16x32xf32>
    %12 = arith.addf %9, %11 : vector<16x32xf32>
    %cst_11 = arith.constant 0.000000e+00 : f32
    %13 = vector.broadcast %cst_11 : f32 to vector<16x32xf32>
    %14 = arith.maximumf %12, %13 : vector<16x32xf32>
    %c0_12 = arith.constant 0 : index
    %c0_13 = arith.constant 0 : index
    %15 = vector.load %arg6[%c0_12, %c0_13] : memref<32x128xf32, #tpu.memory_space<vmem>>, vector<32x128xf32>
    %cst_14 = arith.constant dense<0.000000e+00> : vector<16x128xf32>
    %16 = tpu.matmul %14, %15, %cst_14 {dimension_numbers = #tpu.dot_dimension_numbers<[1], [0], [0], [1], [0, 0, 1, 1], [], []>} : vector<16x32xf32>, vector<32x128xf32>, vector<16x128xf32> -> vector<16x128xf32>
    %c0_15 = arith.constant 0 : index
    %c0_16 = arith.constant 0 : index
    %17 = vector.load %arg7[%c0_15, %c0_16] : memref<1x128xf32, #tpu.memory_space<vmem>>, vector<1x128xf32>
    %18 = vector.broadcast %17 : vector<1x128xf32> to vector<16x128xf32>
    %19 = arith.addf %16, %18 : vector<16x128xf32>
    %c0_17 = arith.constant 0 : index
    %c0_18 = arith.constant 0 : index
    %20 = vector.load %arg8[%c0_17, %c0_18] : memref<16x128xf32, #tpu.memory_space<vmem>>, vector<16x128xf32>
    tpu.vector_store %arg8[%c0_17, %c0_18], %19 {strides = array<i32>} : memref<16x128xf32, #tpu.memory_space<vmem>>, vector<16x128xf32>,
    return
  }
  func.func @transform_0(%arg0: i32) -> (i32, i32) {
    %c0_i32 = arith.constant 0 : i32
    %c0_i32_0 = arith.constant 0 : i32
    return %arg0, %c0_i32 : i32, i32
  }
  func.func @transform_1(%arg0: i32) -> (i32, i32) {
    %c0_i32 = arith.constant 0 : i32
    %c0_i32_0 = arith.constant 0 : i32
    %c0_i32_1 = arith.constant 0 : i32
    return %c0_i32, %c0_i32_0 : i32, i32
  }
  func.func @transform_2(%arg0: i32) -> (i32, i32) {
    %c0_i32 = arith.constant 0 : i32
    %c0_i32_0 = arith.constant 0 : i32
    %c0_i32_1 = arith.constant 0 : i32
    return %c0_i32, %c0_i32_0 : i32, i32
  }
  func.func @transform_3(%arg0: i32) -> (i32, i32) {
    %c0_i32 = arith.constant 0 : i32
    %c0_i32_0 = arith.constant 0 : i32
    %c0_i32_1 = arith.constant 0 : i32
    return %c0_i32, %c0_i32_0 : i32, i32
  }
  func.func @transform_4(%arg0: i32) -> (i32, i32) {
    %c0_i32 = arith.constant 0 : i32
    %c0_i32_0 = arith.constant 0 : i32
    %c0_i32_1 = arith.constant 0 : i32
    return %c0_i32, %c0_i32_0 : i32, i32
  }
  func.func @transform_5(%arg0: i32) -> (i32, i32) {
    %c0_i32 = arith.constant 0 : i32
    %c0_i32_0 = arith.constant 0 : i32
    %c0_i32_1 = arith.constant 0 : i32
    return %c0_i32, %c0_i32_0 : i32, i32
  }
  func.func @transform_6(%arg0: i32) -> (i32, i32) {
    %c0_i32 = arith.constant 0 : i32
    %c0_i32_0 = arith.constant 0 : i32
    %c0_i32_1 = arith.constant 0 : i32
    return %c0_i32, %c0_i32_0 : i32, i32
  }
  func.func @transform_7(%arg0: i32) -> (i32, i32) {
    %c0_i32 = arith.constant 0 : i32
    %c0_i32_0 = arith.constant 0 : i32
    return %arg0, %c0_i32 : i32, i32
  }
}

</mosaic_0001>

<llo_original>
// kernel: tpu_custom_call.1
$region0: #{tpu_custom_call.1}
  #allocation0 [shape = 'u32[]', space=smem, size = 0x4, offset = 0x4, fixed_abs, tag = 'smem constant byte address 0x4 - core index']
  #allocation1 [shape = 'u32[144,128]{1,0:T(1,128)}', space=vmem, size = 0x12000, scoped, tag = 'internal scratch']
  %s0 = inlined_call_operand.vmem [shape: f32[64,8], index: 0, kind: input, shape index: {}]
  %s1 = inlined_call_operand.vmem [shape: f32[8,32], index: 1, kind: input, shape index: {}]
  %s2 = inlined_call_operand.vmem [shape: f32[1,32], index: 2, kind: input, shape index: {}]
  %s3 = inlined_call_operand.vmem [shape: f32[32,32], index: 3, kind: input, shape index: {}]
  %s4 = inlined_call_operand.vmem [shape: f32[1,32], index: 4, kind: input, shape index: {}]
  %s5 = inlined_call_operand.vmem [shape: f32[32,128], index: 5, kind: input, shape index: {}]
  %s6 = inlined_call_operand.vmem [shape: f32[1,128], index: 6, kind: input, shape index: {}]
  %s7 = inlined_call_operand.hbm [shape: f32[64,128], index: 7, kind: output, shape index: {}]
  %s8 = sld [smem:[#allocation0]]
  $region61: #{tpu_custom_call.1} parent=0
    _
  %s10 = ssub.s32 1, %s8
  %s11 = scalar_select 0, %s10, %s8
  $region1: #{tpu_custom_call.1} parent=0
    #allocation2 [shape = 'u8[16384]{0}', space=vmem, size = 0x4000, scoped, tag = 'output window, operand 0']
    #allocation3 [shape = 's32[2]{0}', space=sflag, size = 0x8, scoped, tag = 'scoped memory for tpu_custom_call.1']
    %12 = vsyncpa [#allocation3], 0
    %s13 = scalar_lea.sflag [#allocation3], 1
    %14 = vsyncpa %s13, 0
    loop: start=0, step=1, limit=6
    $region2: #{tpu_custom_call.1} parent=1 // loop_pre_header
      _
    $region3: #{tpu_custom_call.1} parent=1 // loop_header
      %s16 = sphi 0, %s20
      %p17 = scmp.ge.s32.totalorder %s16, 6
      %s26 = sphi 0, %s28
      %s29 = sphi 0, %s26
      %s30 = sphi 0, %s29
      %s46 = sphi 0, %s30
      %s50 = sphi 0, %s50
      %s52 = sphi 0, %s50
      %s53 = sphi 0, %s52
      %s67 = sphi 0, %s53
      %s71 = sphi 0, %s71
      %s73 = sphi 0, %s71
      %s74 = sphi 0, %s73
      %s88 = sphi 0, %s74
      %s92 = sphi 0, %s92
      %s94 = sphi 0, %s92
      %s95 = sphi 0, %s94
      %s109 = sphi 0, %s95
      %s113 = sphi 0, %s113
      %s115 = sphi 0, %s113
      %s116 = sphi 0, %s115
      %s130 = sphi 0, %s116
      %s134 = sphi 0, %s134
      %s136 = sphi 0, %s134
      %s137 = sphi 0, %s136
      %s151 = sphi 0, %s137
      %s155 = sphi 0, %s155
      %s157 = sphi 0, %s155
      %s158 = sphi 0, %s157
      %s172 = sphi 0, %s158
      %s178 = sphi 0, %s180
      %s181 = sphi 0, %s178
      %s182 = sphi 0, %s181
      %s198 = sphi 0, %s182
    $region4: #{tpu_custom_call.1} parent=1 // loop_header_branch
      %19 = sbr.rel (%p17) target = $region8
    $region5: #{tpu_custom_call.1} parent=1 // loop_body
      %s21 = ssub.s32 %s16, 1
      %s22 = ssub.s32 %s16, 2
      %s23 = sadd.s32 %s16, 1
      %s24 = ssub.s32 %s16, %s23
      %p25 = scmp.eq.s32.totalorder %s24, 0
      %s27 = sadd.s32 %s26, 1
      %s28 = scalar_select %p25, %s26, %s27
      %p31 = pneg %p25
      %p32 = scmp.eq.s32.totalorder %s16, 3
      %p33 = por %p31, %p32
      %p34 = scmp.ne.s32.totalorder %s26, %s29
      %p35 = scmp.eq.s32.totalorder %s16, 0
      %p36 = por %p34, %p35
      %p37 = scmp.ne.s32.totalorder %s26, %s29
      %p38 = scmp.eq.s32.totalorder %s21, 3
      %p39 = por %p37, %p38
      %p40 = scmp.ne.s32.totalorder %s29, %s30
      %p41 = scmp.eq.s32.totalorder %s21, 0
      %p42 = por %p40, %p41
      %p43 = scmp.ne.s32.totalorder %s29, %s30
      %p44 = scmp.eq.s32.totalorder %s22, 3
      %p45 = por %p43, %p44
      %p47 = scmp.ne.s32.totalorder %s30, %s46
      %p48 = scmp.eq.s32.totalorder %s22, 0
      %p49 = por %p47, %p48
      %s51 = sadd.s32 %s50, 1
      %p54 = scmp.eq.s32.totalorder %s16, 3
      %p55 = scmp.ne.s32.totalorder %s50, %s52
      %p56 = scmp.eq.s32.totalorder %s16, 0
      %p57 = por %p55, %p56
      %p58 = scmp.ne.s32.totalorder %s50, %s52
      %p59 = scmp.eq.s32.totalorder %s21, 3
      %p60 = por %p58, %p59
      %p61 = scmp.ne.s32.totalorder %s52, %s53
      %p62 = scmp.eq.s32.totalorder %s21, 0
      %p63 = por %p61, %p62
      %p64 = scmp.ne.s32.totalorder %s52, %s53
      %p65 = scmp.eq.s32.totalorder %s22, 3
      %p66 = por %p64, %p65
      %p68 = scmp.ne.s32.totalorder %s53, %s67
      %p69 = scmp.eq.s32.totalorder %s22, 0
      %p70 = por %p68, %p69
      %s72 = sadd.s32 %s71, 1
      %p75 = scmp.eq.s32.totalorder %s16, 3
      %p76 = scmp.ne.s32.totalorder %s71, %s73
      %p77 = scmp.eq.s32.totalorder %s16, 0
      %p78 = por %p76, %p77
      %p79 = scmp.ne.s32.totalorder %s71, %s73
      %p80 = scmp.eq.s32.totalorder %s21, 3
      %p81 = por %p79, %p80
      %p82 = scmp.ne.s32.totalorder %s73, %s74
      %p83 = scmp.eq.s32.totalorder %s21, 0
      %p84 = por %p82, %p83
      %p85 = scmp.ne.s32.totalorder %s73, %s74
      %p86 = scmp.eq.s32.totalorder %s22, 3
      %p87 = por %p85, %p86
      %p89 = scmp.ne.s32.totalorder %s74, %s88
      %p90 = scmp.eq.s32.totalorder %s22, 0
      %p91 = por %p89, %p90
      %s93 = sadd.s32 %s92, 1
      %p96 = scmp.eq.s32.totalorder %s16, 3
      %p97 = scmp.ne.s32.totalorder %s92, %s94
      %p98 = scmp.eq.s32.totalorder %s16, 0
      %p99 = por %p97, %p98
      %p100 = scmp.ne.s32.totalorder %s92, %s94
      %p101 = scmp.eq.s32.totalorder %s21, 3
      %p102 = por %p100, %p101
      %p103 = scmp.ne.s32.totalorder %s94, %s95
      %p104 = scmp.eq.s32.totalorder %s21, 0
      %p105 = por %p103, %p104
      %p106 = scmp.ne.s32.totalorder %s94, %s95
      %p107 = scmp.eq.s32.totalorder %s22, 3
      %p108 = por %p106, %p107
      %p110 = scmp.ne.s32.totalorder %s95, %s109
      %p111 = scmp.eq.s32.totalorder %s22, 0
      %p112 = por %p110, %p111
      %s114 = sadd.s32 %s113, 1
      %p117 = scmp.eq.s32.totalorder %s16, 3
      %p118 = scmp.ne.s32.totalorder %s113, %s115
      %p119 = scmp.eq.s32.totalorder %s16, 0
      %p120 = por %p118, %p119
      %p121 = scmp.ne.s32.totalorder %s113, %s115
      %p122 = scmp.eq.s32.totalorder %s21, 3
      %p123 = por %p121, %p122
      %p124 = scmp.ne.s32.totalorder %s115, %s116
      %p125 = scmp.eq.s32.totalorder %s21, 0
      %p126 = por %p124, %p125
      %p127 = scmp.ne.s32.totalorder %s115, %s116
      %p128 = scmp.eq.s32.totalorder %s22, 3
      %p129 = por %p127, %p128
      %p131 = scmp.ne.s32.totalorder %s116, %s130
      %p132 = scmp.eq.s32.totalorder %s22, 0
      %p133 = por %p131, %p132
      %s135 = sadd.s32 %s134, 1
      %p138 = scmp.eq.s32.totalorder %s16, 3
      %p139 = scmp.ne.s32.totalorder %s134, %s136
      %p140 = scmp.eq.s32.totalorder %s16, 0
      %p141 = por %p139, %p140
      %p142 = scmp.ne.s32.totalorder %s134, %s136
      %p143 = scmp.eq.s32.totalorder %s21, 3
      %p144 = por %p142, %p143
      %p145 = scmp.ne.s32.totalorder %s136, %s137
      %p146 = scmp.eq.s32.totalorder %s21, 0
      %p147 = por %p145, %p146
      %p148 = scmp.ne.s32.totalorder %s136, %s137
      %p149 = scmp.eq.s32.totalorder %s22, 3
      %p150 = por %p148, %p149
      %p152 = scmp.ne.s32.totalorder %s137, %s151
      %p153 = scmp.eq.s32.totalorder %s22, 0
      %p154 = por %p152, %p153
      %s156 = sadd.s32 %s155, 1
      %p159 = scmp.eq.s32.totalorder %s16, 3
      %p160 = scmp.ne.s32.totalorder %s155, %s157
      %p161 = scmp.eq.s32.totalorder %s16, 0
      %p162 = por %p160, %p161
      %p163 = scmp.ne.s32.totalorder %s155, %s157
      %p164 = scmp.eq.s32.totalorder %s21, 3
      %p165 = por %p163, %p164
      %p166 = scmp.ne.s32.totalorder %s157, %s158
      %p167 = scmp.eq.s32.totalorder %s21, 0
      %p168 = por %p166, %p167
      %p169 = scmp.ne.s32.totalorder %s157, %s158
      %p170 = scmp.eq.s32.totalorder %s22, 3
      %p171 = por %p169, %p170
      %p173 = scmp.ne.s32.totalorder %s158, %s172
      %p174 = scmp.eq.s32.totalorder %s22, 0
      %p175 = por %p173, %p174
      %s176 = ssub.s32 %s16, %s23
      %p177 = scmp.eq.s32.totalorder %s176, 0
      %s179 = sadd.s32 %s178, 1
      %s180 = scalar_select %p177, %s178, %s179
      %p183 = pneg %p177
      %p184 = scmp.eq.s32.totalorder %s16, 3
      %p185 = por %p183, %p184
      %p186 = scmp.ne.s32.totalorder %s178, %s181
      %p187 = scmp.eq.s32.totalorder %s16, 0
      %p188 = por %p186, %p187
      %p189 = scmp.ne.s32.totalorder %s178, %s181
      %p190 = scmp.eq.s32.totalorder %s21, 3
      %p191 = por %p189, %p190
      %p192 = scmp.ne.s32.totalorder %s181, %s182
      %p193 = scmp.eq.s32.totalorder %s21, 0
      %p194 = por %p192, %p193
      %p195 = scmp.ne.s32.totalorder %s181, %s182
      %p196 = scmp.eq.s32.totalorder %s22, 3
      %p197 = por %p195, %p196
      %p199 = scmp.ne.s32.totalorder %s182, %s198
      %p200 = scmp.eq.s32.totalorder %s22, 0
      %p201 = por %p199, %p200
      %p202 = scmp.le.s32.totalorder 1, %s16
      %p203 = scmp.lt.s32.totalorder %s16, 5
      %p204 = pnand %p202, %p203
      %p205 = pneg %p204
      // Predicated region
      $region9: #{tpu_custom_call.1} parent=5 // pred_check
        _
      $region10: #{tpu_custom_call.1} parent=5 // pred_check_branch
        %207 = sbr.rel (%p204) target = $region12
      $region11: #{tpu_custom_call.1} parent=5 // pred_region
        %s208 = ssub.s32 %s16, 1
        // Predicated region
        $region13: #{tpu_custom_call.1} parent=11 // pred_check
          %p209 = pneg %p63
        $region14: #{tpu_custom_call.1} parent=11 // pred_check_branch
          %211 = sbr.rel (%p209) target = $region16
        $region15: #{tpu_custom_call.1} parent=11 // pred_region
          _
        $region16: #{tpu_custom_call.1} parent=11 // pred_fallthru
          _
        // Predicated region
        $region17: #{tpu_custom_call.1} parent=11 // pred_check
          %p212 = pneg %p84
        $region18: #{tpu_custom_call.1} parent=11 // pred_check_branch
          %214 = sbr.rel (%p212) target = $region20
        $region19: #{tpu_custom_call.1} parent=11 // pred_region
          _
        $region20: #{tpu_custom_call.1} parent=11 // pred_fallthru
          _
        // Predicated region
        $region21: #{tpu_custom_call.1} parent=11 // pred_check
          %p215 = pneg %p105
        $region22: #{tpu_custom_call.1} parent=11 // pred_check_branch
          %217 = sbr.rel (%p215) target = $region24
        $region23: #{tpu_custom_call.1} parent=11 // pred_region
          _
        $region24: #{tpu_custom_call.1} parent=11 // pred_fallthru
          _
        // Predicated region
        $region25: #{tpu_custom_call.1} parent=11 // pred_check
          %p218 = pneg %p126
        $region26: #{tpu_custom_call.1} parent=11 // pred_check_branch
          %220 = sbr.rel (%p218) target = $region28
        $region27: #{tpu_custom_call.1} parent=11 // pred_region
          _
        $region28: #{tpu_custom_call.1} parent=11 // pred_fallthru
          _
        // Predicated region
        $region29: #{tpu_custom_call.1} parent=11 // pred_check
          %p221 = pneg %p147
        $region30: #{tpu_custom_call.1} parent=11 // pred_check_branch
          %223 = sbr.rel (%p221) target = $region32
        $region31: #{tpu_custom_call.1} parent=11 // pred_region
          _
        $region32: #{tpu_custom_call.1} parent=11 // pred_fallthru
          _
        // Predicated region
        $region33: #{tpu_custom_call.1} parent=11 // pred_check
          %p224 = pneg %p168
        $region34: #{tpu_custom_call.1} parent=11 // pred_check_branch
          %226 = sbr.rel (%p224) target = $region36
        $region35: #{tpu_custom_call.1} parent=11 // pred_region
          _
        $region36: #{tpu_custom_call.1} parent=11 // pred_fallthru
          _
      $region12: #{tpu_custom_call.1} parent=5 // pred_fallthru
        _
      %p227 = scmp.lt.s32.totalorder %s16, 4
      // Predicated region
      $region37: #{tpu_custom_call.1} parent=5 // pred_check
        %p228 = pneg %p227
      $region38: #{tpu_custom_call.1} parent=5 // pred_check_branch
        %230 = sbr.rel (%p228) target = $region40
      $region39: #{tpu_custom_call.1} parent=5 // pred_region
        // Predicated region
        $region41: #{tpu_custom_call.1} parent=39 // pred_check
          %p231 = pneg %p36
        $region42: #{tpu_custom_call.1} parent=39 // pred_check_branch
          %233 = sbr.rel (%p231) target = $region44
        $region43: #{tpu_custom_call.1} parent=39 // pred_region
          %s234 = smul.u32 2, %s16
          %p235 = scmp.lt.s32.totalorder %s234, 7
          %s236 = scalar_select %p235, %s234, 7
          %s237 = smul.addr %s236, 8
          %s238 = scalar_lea.vmem %s0, %s237
          %s239 = smul.u32 2, %s16
        $region44: #{tpu_custom_call.1} parent=39 // pred_fallthru
          _
      $region40: #{tpu_custom_call.1} parent=5 // pred_fallthru
        _
      %p240 = scmp.le.s32.totalorder 1, %s16
      %p241 = scmp.lt.s32.totalorder %s16, 5
      %p242 = pnand %p240, %p241
      %p243 = pneg %p242
      // Predicated region
      $region45: #{tpu_custom_call.1} parent=5 // pred_check
        _
      $region46: #{tpu_custom_call.1} parent=5 // pred_check_branch
        %245 = sbr.rel (%p242) target = $region48
      $region47: #{tpu_custom_call.1} parent=5 // pred_region
        %s246 = ssub.s32 %s16, 1
        %s247 = smul.u32 2, %s21
        %p248 = scmp.lt.s32.totalorder %s247, 7
        %s249 = scalar_select %p248, %s247, 7
        %s250 = smul.addr %s249, 8
        %s251 = scalar_lea.vmem %s0, %s250
        %p252 = pneg %p42
        %p253 = pneg %p39
        %p254 = pneg %p63
        %p255 = pneg %p60
        %p256 = pneg %p84
        %p257 = pneg %p81
        %p258 = pneg %p105
        %p259 = pneg %p102
        %p260 = pneg %p126
        %p261 = pneg %p123
        %p262 = pneg %p147
        %p263 = pneg %p144
        %p264 = pneg %p168
        %p265 = pneg %p165
        %p266 = pneg %p194
        %p267 = pneg %p191
        %s268 = sand.u32 %s181, 1
        %s269 = scalar_lea.sflag [#allocation3], %s268
        %s270 = sand.u32 %s181, 1
        %s271 = smul.addr %s270, 16
        %s272 = scalar_lea.vmem [#allocation2], %s271
        %s273 = smul.u32 2, %s21
        %p274 = scmp.lt.s32.totalorder %s273, 7
        %s275 = scalar_select %p274, %s273, 7
        %s276 = smul.addr %s275, 8
        %s277 = scalar_lea.vmem %s0, %s276
        %s278 = smul.u32 2, %s21
        %s279 = smul.u32 2, %s21
        %v280 = vld [vmem:[%s277] sm:$0xff]
        %v281 = vld [vmem:[%s277 + $0x8] sm:$0xff]
        %v282 = vld [vmem:[%s1] sm:$0xff]
        %v283 = vld [vmem:[%s2] sm:$0x1]
        %v285 = vlaneseq
        %v286 = vshrl.u32 %v285, 7
        %v287 = vsub.s32 0, %v286
        %v288 = vrot.slane %v283, %v287
        %vm290 = vcmask 64512
        %v292 = vsel %vm290, %v280, 0
        %v295 = vsel %vm290, %v281, 0
        %297 = vmatprep.subr.mxu0 0.0
        %298 = vmatpush1.msra.mxu0 %v282
        %299 = vmatprep.subr.mxu0 0.0
        %300 = vmatpush1.msra.mxu0 0.0
        %301 = vmatprep.subr.mxu0 0.0
        %302 = vmatpush1.msra.mxu0 0.0
        %303 = vmatprep.subr.mxu0 0.0
        %304 = vmatpush1.msra.mxu0 0.0
        %305 = vmatprep.subr.mxu0 0.0
        %306 = vmatpush1.msra.mxu0 0.0
        %307 = vmatprep.subr.mxu0 0.0
        %308 = vmatpush1.msra.mxu0 0.0
        %309 = vmatprep.subr.mxu0 0.0
        %310 = vmatpush1.msra.mxu0 0.0
        %311 = vmatprep.subr.mxu0 0.0
        %312 = vmatpush1.msra.mxu0 0.0
        %313 = vmatprep.subr.mxu0 0.0
        %314 = vmatpush1.msra.mxu0 0.0
        %315 = vmatprep.subr.mxu0 0.0
        %316 = vmatpush1.msra.mxu0 0.0
        %317 = vmatprep.subr.mxu0 0.0
        %318 = vmatpush1.msra.mxu0 0.0
        %319 = vmatprep.subr.mxu0 0.0
        %320 = vmatpush1.msra.mxu0 0.0
        %321 = vmatprep.subr.mxu0 0.0
        %322 = vmatpush1.msra.mxu0 0.0
        %323 = vmatprep.subr.mxu0 0.0
        %324 = vmatpush1.msra.mxu0 0.0
        %325 = vmatprep.subr.mxu0 0.0
        %326 = vmatpush1.msra.mxu0 0.0
        %327 = vmatprep.subr.mxu0 0.0
        %328 = vmatpush1.msra.mxu0 0.0
        %329 = vmatprep.subr.mxu0 0.0
        %330 = vmatpush1.msra.mxu0 0.0
        %331 = vmatprep.subr.mxu0 0.0
        %332 = vmatpush1.msra.mxu0 0.0
        %333 = vmatprep.subr.mxu0 0.0
        %334 = vmatpush1.msra.mxu0 0.0
        %335 = vmatprep.subr.mxu0 0.0
        %336 = vmatpush1.msra.mxu0 0.0
        %337 = vmatprep.subr.mxu0 0.0
        %338 = vmatpush1.msra.mxu0 0.0
        %339 = vmatprep.subr.mxu0 0.0
        %340 = vmatpush1.msra.mxu0 0.0
        %341 = vmatprep.subr.mxu0 0.0
        %342 = vmatpush1.msra.mxu0 0.0
        %343 = vmatprep.subr.mxu0 0.0
        %344 = vmatpush1.msra.mxu0 0.0
        %345 = vmatprep.subr.mxu0 0.0
        %346 = vmatpush1.msra.mxu0 0.0
        %347 = vmatprep.subr.mxu0 0.0
        %348 = vmatpush1.msra.mxu0 0.0
        %349 = vmatprep.subr.mxu0 0.0
        %350 = vmatpush1.msra.mxu0 0.0
        %351 = vmatprep.subr.mxu0 0.0
        %352 = vmatpush1.msra.mxu0 0.0
        %353 = vmatprep.subr.mxu0 0.0
        %354 = vmatpush1.msra.mxu0 0.0
        %355 = vmatprep.subr.mxu0 0.0
        %356 = vmatpush1.msra.mxu0 0.0
        %357 = vmatprep.subr.mxu0 0.0
        %358 = vmatpush1.msra.mxu0 0.0
        %359 = vmatprep.subr.mxu0 0.0
        %360 = vmatpush1.msra.mxu0 0.0
        %361 = vmatprep.mubr.f32.mxu0 0.0
        %362 = vmatmul.mubr.f32.gmra.mrb[0].mxu0 %v292
        %v363 = vpop.f32.mrb[0].mxu0
        %v364 = vadd.f32 %v288, %v363
        %v365 = vpop.f32.mrb[0].mxu0
        %366 = vmatprep.mubr.f32.mxu0 0.0
        %367 = vmatmul.mubr.f32.gmra.mrb[0].mxu0 %v295
        %v368 = vpop.f32.mrb[0].mxu0
        %v369 = vadd.f32 %v288, %v368
        %v370 = vpop.f32.mrb[0].mxu0
        %371 = vdwg.mxu0
        %v372 = vmax.f32 %v364, 0.0
        %v373 = vmax.f32 %v369, 0.0
        %v374 = vld [vmem:[%s3] sm:$0xff]
        %v375 = vld [vmem:[%s3 + $0x8] sm:$0xff]
        %v376 = vld [vmem:[%s3 + $0x10] sm:$0xff]
        %v377 = vld [vmem:[%s3 + $0x18] sm:$0xff]
        %v378 = vld [vmem:[%s4] sm:$0x1]
        %v380 = vlaneseq
        %v381 = vshrl.u32 %v380, 7
        %v382 = vsub.s32 0, %v381
        %v383 = vrot.slane %v378, %v382
        %vm385 = vcmask 261120
        %v387 = vsel %vm385, %v372, 0
        %v390 = vsel %vm385, %v373, 0
        %392 = vmatprep.subr.mxu0 0.0
        %393 = vmatpush1.msra.mxu0 %v374
        %394 = vmatprep.subr.mxu0 0.0
        %395 = vmatpush1.msra.mxu0 %v375
        %396 = vmatprep.subr.mxu0 0.0
        %397 = vmatpush1.msra.mxu0 %v376
        %398 = vmatprep.subr.mxu0 0.0
        %399 = vmatpush1.msra.mxu0 %v377
        %400 = vmatprep.subr.mxu0 0.0
        %401 = vmatpush1.msra.mxu0 0.0
        %402 = vmatprep.subr.mxu0 0.0
        %403 = vmatpush1.msra.mxu0 0.0
        %404 = vmatprep.subr.mxu0 0.0
        %405 = vmatpush1.msra.mxu0 0.0
        %406 = vmatprep.subr.mxu0 0.0
        %407 = vmatpush1.msra.mxu0 0.0
        %408 = vmatprep.subr.mxu0 0.0
        %409 = vmatpush1.msra.mxu0 0.0
        %410 = vmatprep.subr.mxu0 0.0
        %411 = vmatpush1.msra.mxu0 0.0
        %412 = vmatprep.subr.mxu0 0.0
        %413 = vmatpush1.msra.mxu0 0.0
        %414 = vmatprep.subr.mxu0 0.0
        %415 = vmatpush1.msra.mxu0 0.0
        %416 = vmatprep.subr.mxu0 0.0
        %417 = vmatpush1.msra.mxu0 0.0
        %418 = vmatprep.subr.mxu0 0.0
        %419 = vmatpush1.msra.mxu0 0.0
        %420 = vmatprep.subr.mxu0 0.0
        %421 = vmatpush1.msra.mxu0 0.0
        %422 = vmatprep.subr.mxu0 0.0
        %423 = vmatpush1.msra.mxu0 0.0
        %424 = vmatprep.subr.mxu0 0.0
        %425 = vmatpush1.msra.mxu0 0.0
        %426 = vmatprep.subr.mxu0 0.0
        %427 = vmatpush1.msra.mxu0 0.0
        %428 = vmatprep.subr.mxu0 0.0
        %429 = vmatpush1.msra.mxu0 0.0
        %430 = vmatprep.subr.mxu0 0.0
        %431 = vmatpush1.msra.mxu0 0.0
        %432 = vmatprep.subr.mxu0 0.0
        %433 = vmatpush1.msra.mxu0 0.0
        %434 = vmatprep.subr.mxu0 0.0
        %435 = vmatpush1.msra.mxu0 0.0
        %436 = vmatprep.subr.mxu0 0.0
        %437 = vmatpush1.msra.mxu0 0.0
        %438 = vmatprep.subr.mxu0 0.0
        %439 = vmatpush1.msra.mxu0 0.0
        %440 = vmatprep.subr.mxu0 0.0
        %441 = vmatpush1.msra.mxu0 0.0
        %442 = vmatprep.subr.mxu0 0.0
        %443 = vmatpush1.msra.mxu0 0.0
        %444 = vmatprep.subr.mxu0 0.0
        %445 = vmatpush1.msra.mxu0 0.0
        %446 = vmatprep.subr.mxu0 0.0
        %447 = vmatpush1.msra.mxu0 0.0
        %448 = vmatprep.subr.mxu0 0.0
        %449 = vmatpush1.msra.mxu0 0.0
        %450 = vmatprep.subr.mxu0 0.0
        %451 = vmatpush1.msra.mxu0 0.0
        %452 = vmatprep.subr.mxu0 0.0
        %453 = vmatpush1.msra.mxu0 0.0
        %454 = vmatprep.subr.mxu0 0.0
        %455 = vmatpush1.msra.mxu0 0.0
        %456 = vmatprep.mubr.f32.mxu0 0.0
        %457 = vmatmul.mubr.f32.gmra.mrb[0].mxu0 %v387
        %v458 = vpop.f32.mrb[0].mxu0
        %v459 = vadd.f32 %v383, %v458
        %v460 = vpop.f32.mrb[0].mxu0
        %461 = vmatprep.mubr.f32.mxu0 0.0
        %462 = vmatmul.mubr.f32.gmra.mrb[0].mxu0 %v390
        %v463 = vpop.f32.mrb[0].mxu0
        %v464 = vadd.f32 %v383, %v463
        %v465 = vpop.f32.mrb[0].mxu0
        %466 = vdwg.mxu0
        %v467 = vmax.f32 %v459, 0.0
        %v468 = vmax.f32 %v464, 0.0
        %v469 = vld [vmem:[%s5] sm:$0xff]
        %v470 = vld [vmem:[%s5 + $0x8] sm:$0xff]
        %v471 = vld [vmem:[%s5 + $0x10] sm:$0xff]
        %v472 = vld [vmem:[%s5 + $0x18] sm:$0xff]
        %v473 = vld [vmem:[%s6] sm:$0x1]
        %v475 = vlaneseq
        %v476 = vshrl.u32 %v475, 7
        %v477 = vsub.s32 0, %v476
        %v478 = vrot.slane %v473, %v477
        %v481 = vsel %vm385, %v467, 0
        %v484 = vsel %vm385, %v468, 0
        %486 = vmatprep.subr.mxu0 0.0
        %487 = vmatpush1.msra.mxu0 %v469
        %488 = vmatprep.subr.mxu0 0.0
        %489 = vmatpush1.msra.mxu0 %v470
        %490 = vmatprep.subr.mxu0 0.0
        %491 = vmatpush1.msra.mxu0 %v471
        %492 = vmatprep.subr.mxu0 0.0
        %493 = vmatpush1.msra.mxu0 %v472
        %494 = vmatprep.subr.mxu0 0.0
        %495 = vmatpush1.msra.mxu0 0.0
        %496 = vmatprep.subr.mxu0 0.0
        %497 = vmatpush1.msra.mxu0 0.0
        %498 = vmatprep.subr.mxu0 0.0
        %499 = vmatpush1.msra.mxu0 0.0
        %500 = vmatprep.subr.mxu0 0.0
        %501 = vmatpush1.msra.mxu0 0.0
        %502 = vmatprep.subr.mxu0 0.0
        %503 = vmatpush1.msra.mxu0 0.0
        %504 = vmatprep.subr.mxu0 0.0
        %505 = vmatpush1.msra.mxu0 0.0
        %506 = vmatprep.subr.mxu0 0.0
        %507 = vmatpush1.msra.mxu0 0.0
        %508 = vmatprep.subr.mxu0 0.0
        %509 = vmatpush1.msra.mxu0 0.0
        %510 = vmatprep.subr.mxu0 0.0
        %511 = vmatpush1.msra.mxu0 0.0
        %512 = vmatprep.subr.mxu0 0.0
        %513 = vmatpush1.msra.mxu0 0.0
        %514 = vmatprep.subr.mxu0 0.0
        %515 = vmatpush1.msra.mxu0 0.0
        %516 = vmatprep.subr.mxu0 0.0
        %517 = vmatpush1.msra.mxu0 0.0
        %518 = vmatprep.subr.mxu0 0.0
        %519 = vmatpush1.msra.mxu0 0.0
        %520 = vmatprep.subr.mxu0 0.0
        %521 = vmatpush1.msra.mxu0 0.0
        %522 = vmatprep.subr.mxu0 0.0
        %523 = vmatpush1.msra.mxu0 0.0
        %524 = vmatprep.subr.mxu0 0.0
        %525 = vmatpush1.msra.mxu0 0.0
        %526 = vmatprep.subr.mxu0 0.0
        %527 = vmatpush1.msra.mxu0 0.0
        %528 = vmatprep.subr.mxu0 0.0
        %529 = vmatpush1.msra.mxu0 0.0
        %530 = vmatprep.subr.mxu0 0.0
        %531 = vmatpush1.msra.mxu0 0.0
        %532 = vmatprep.subr.mxu0 0.0
        %533 = vmatpush1.msra.mxu0 0.0
        %534 = vmatprep.subr.mxu0 0.0
        %535 = vmatpush1.msra.mxu0 0.0
        %536 = vmatprep.subr.mxu0 0.0
        %537 = vmatpush1.msra.mxu0 0.0
        %538 = vmatprep.subr.mxu0 0.0
        %539 = vmatpush1.msra.mxu0 0.0
        %540 = vmatprep.subr.mxu0 0.0
        %541 = vmatpush1.msra.mxu0 0.0
        %542 = vmatprep.subr.mxu0 0.0
        %543 = vmatpush1.msra.mxu0 0.0
        %544 = vmatprep.subr.mxu0 0.0
        %545 = vmatpush1.msra.mxu0 0.0
        %546 = vmatprep.subr.mxu0 0.0
        %547 = vmatpush1.msra.mxu0 0.0
        %548 = vmatprep.subr.mxu0 0.0
        %549 = vmatpush1.msra.mxu0 0.0
        %550 = vmatprep.mubr.f32.mxu0 0.0
        %551 = vmatmul.mubr.f32.gmra.mrb[0].mxu0 %v481
        %v552 = vpop.f32.mrb[0].mxu0
        %v553 = vadd.f32 %v478, %v552
        %v554 = vpop.f32.mrb[0].mxu0
        %555 = vmatprep.mubr.f32.mxu0 0.0
        %556 = vmatmul.mubr.f32.gmra.mrb[0].mxu0 %v484
        %v557 = vpop.f32.mrb[0].mxu0
        %v558 = vadd.f32 %v478, %v557
        %v559 = vpop.f32.mrb[0].mxu0
        %560 = vdwg.mxu0
        %561 = vst [vmem:[%s272] sm:$0xff] %v553
        %562 = vst [vmem:[%s272 + $0x8] sm:$0xff] %v558
        %s563 = sand.u32 %s181, 1
        %s564 = scalar_lea.sflag [#allocation3], %s563
        %s565 = sand.u32 %s181, 1
        %s566 = smul.addr %s565, 16
        %s567 = scalar_lea.vmem [#allocation2], %s566
        // Predicated region
        $region49: #{tpu_custom_call.1} parent=47 // pred_check
          %p568 = pneg %p191
        $region50: #{tpu_custom_call.1} parent=47 // pred_check_branch
          %570 = sbr.rel (%p568) target = $region52
        $region51: #{tpu_custom_call.1} parent=47 // pred_region
          %s571 = smul.u32 2, %s21
          %s573 = ssub.s32 256, 256
          %574 = vsyncadd %s564, %s573
          %s575 = smul.addr %s571, 128
          %s576 = scalar_lea.hbm %s7, %s575
          %s577 = sshll.u32 %s567, 4
          %s578 = int_to_ptr.vmem [resolvable:$true] %s577
          %583 = dma.vmem_to_hbm [thread:$0]  %s578, 256, %s576, %s564, 128, 128, 8
        $region52: #{tpu_custom_call.1} parent=47 // pred_fallthru
          _
      $region48: #{tpu_custom_call.1} parent=5 // pred_fallthru
        _
      %p584 = scmp.le.s32.totalorder 2, %s16
      // Predicated region
      $region53: #{tpu_custom_call.1} parent=5 // pred_check
        %p585 = pneg %p584
      $region54: #{tpu_custom_call.1} parent=5 // pred_check_branch
        %587 = sbr.rel (%p585) target = $region56
      $region55: #{tpu_custom_call.1} parent=5 // pred_region
        %s588 = ssub.s32 %s16, 2
        // Predicated region
        $region57: #{tpu_custom_call.1} parent=55 // pred_check
          %p589 = pneg %p197
        $region58: #{tpu_custom_call.1} parent=55 // pred_check_branch
          %591 = sbr.rel (%p589) target = $region60
        $region59: #{tpu_custom_call.1} parent=55 // pred_region
          %s592 = sand.u32 %s182, 1
          %s593 = scalar_lea.sflag [#allocation3], %s592
          %s594 = sand.u32 %s182, 1
          %s595 = smul.addr %s594, 16
          %s596 = scalar_lea.vmem [#allocation2], %s595
          %597 = dma.done %s593, 256
        $region60: #{tpu_custom_call.1} parent=55 // pred_fallthru
          _
      $region56: #{tpu_custom_call.1} parent=5 // pred_fallthru
        _
    $region6: #{tpu_custom_call.1} parent=1 // loop_footer
      %s20 = sadd.s32 1, %s16
    $region7: #{tpu_custom_call.1} parent=1 // loop_footer_branch
      %15 = sbr.rel target = $region3
    $region8: #{tpu_custom_call.1} parent=1 // loop_exit
      _
    %598 = vsyncpa [#allocation3], 1
    %s599 = scalar_lea.sflag [#allocation3], 1
    %600 = vsyncpa %s599, 1

</llo_original>
